<compile_context>
chip_gen: v6e
topology: v6e:2x2x1
jax: 0.10.0
libtpu: 0.0.40
codegen_flags: <defaults>
</compile_context>

<pallas_src>
import jax
import jax.numpy as jnp
import numpy as np
from jax.experimental import pallas as pl
from jax.experimental.pallas import tpu as pltpu

POOL_K = 5   # nn.MaxPool1d(5, stride=2)
POOL_S = 2

MIN_GRID_STEPS = 8              # keep >= this many row tiles (megacore split)
TARGET_BLOCK_BYTES = 2 << 20    # ~2 MiB activation tile per grid step


def _round_up(v, m):
    return -(-v // m) * m


def final_module_kernel(x_ref, w_ref, b_ref, o_ref):
    """One row tile of: sigmoid( maxpool1d(x, 5, stride=2) @ W + b ).

    The stride-2 downsample is pre-folded into W (odd rows zero), so here we
    only need the sliding max over 5 unit-stride shifts (VPU) and one matmul.
    """
    x = x_ref[...].astype(jnp.float32)          # DMA'd in native dtype, cast here
    L = x.shape[1] - (POOL_K - 1)               # sliding-window count = F - 4
    m = x[:, 0:L]
    for k in range(1, POOL_K):                  # 4 vector max ops on the VPU
        m = jnp.maximum(m, x[:, k:k + L])
    y = jnp.dot(m, w_ref[...], preferred_element_type=jnp.float32) + b_ref[...]
    o_ref[...] = jax.nn.sigmoid(y).astype(o_ref.dtype)


def fold_params(params, d_model):
    """One-time prep (hoisted out of the forward path): fold the stride-2
    column selection of the pool into the linear weight.

      pooled[:, j] = m[:, 2*j]   =>   pooled @ W == m @ W_eff
    where W_eff has W's rows on even indices and zeros on odd indices.
    """
    F = 2 * d_model
    C = params["w"].shape[1]
    Kp = F - (POOL_K - 1)
    w_eff = jnp.zeros((Kp, C), jnp.float32)
    w_eff = w_eff.at[0::POOL_S, :].set(params["w"].astype(jnp.float32))
    bias = params["b"].reshape(1, C).astype(jnp.float32)
    return {"w_eff": w_eff, "b": bias}


def final_module_forward(x, folded, d_model):
    F = 2 * d_model
    w_eff = folded["w_eff"]
    bias = folded["b"]
    Kp, C = w_eff.shape

    # x.contiguous().view(-1, 2*d_model): metadata-only reshape (no copy, no cast).
    xf = x.reshape(-1, F)
    N = xf.shape[0]
    in_itemsize = xf.dtype.itemsize

    # Row tile: target ~TARGET_BLOCK_BYTES per activation block, but keep at
    # least MIN_GRID_STEPS grid steps (when N allows) so the "parallel" row
    # axis actually splits across v7x's two TensorCores.
    rt_target = max(8, (TARGET_BLOCK_BYTES // (F * in_itemsize)) // 8 * 8)
    rt_cap = max(8, _round_up(pl.cdiv(N, MIN_GRID_STEPS), 8))
    Rt = int(min(rt_target, rt_cap))
    num_steps = int(pl.cdiv(N, Rt))             # ragged last block is fine

    # 3-deep buffering on the (pure DMA) activation stream once there are
    # enough grid steps for the extra buffer to matter.
    act_spec_kwargs = {}
    n_in_bufs = 2
    if num_steps >= 4:
        act_spec_kwargs["pipeline_mode"] = pl.Buffered(3)
        n_in_bufs = 3

    # Explicit VMEM budget: pipelined blocks + generous allowance for in-kernel
    # f32 temporaries, ~25% headroom, never below the smallest default scoped
    # limit and well under v7x's 64 MiB physical VMEM.
    in_block = Rt * F * in_itemsize
    out_block = Rt * C * 4
    temps = Rt * (F + (F - POOL_K + 1) + C) * 4
    vmem_bytes = (n_in_bufs * in_block + 2 * out_block
                  + 2 * (Kp * C * 4 + C * 4) + temps)
    vmem_limit = int(min(max(int(vmem_bytes * 1.25), 16 << 20), 48 << 20))

    return pl.pallas_call(
        final_module_kernel,
        out_shape=jax.ShapeDtypeStruct((N, C), jnp.float32),
        grid_spec=pltpu.PrefetchScalarGridSpec(
            num_scalar_prefetch=0,
            grid=(num_steps,),
            in_specs=[
                pl.BlockSpec((Rt, F), lambda i: (i, 0), **act_spec_kwargs),  # activations
                pl.BlockSpec((Kp, C), lambda i: (0, 0)),   # folded weight (VMEM-resident)
                pl.BlockSpec((1, C), lambda i: (0, 0)),    # bias (VMEM-resident)
            ],
            out_specs=pl.BlockSpec((Rt, C), lambda i: (i, 0)),
        ),
        compiler_params=pltpu.CompilerParams(
            dimension_semantics=("parallel",),
            vmem_limit_bytes=vmem_limit,
        ),
    )(xf, w_eff, bias)


def reference(x, params, d_model):
    """Pure-JAX reference of the intended FinalModule semantics."""
    F = 2 * d_model
    xf = x.reshape(-1, F)
    L = (F - POOL_K) // POOL_S + 1
    idx = POOL_S * jnp.arange(L)[:, None] + jnp.arange(POOL_K)[None, :]
    pooled = jnp.max(xf[:, idx], axis=-1)                    # MaxPool1d(5, stride=2)
    y = jnp.dot(pooled, params["w"],
                precision=jax.lax.Precision.HIGHEST) + params["b"]
    return jax.nn.sigmoid(y)


if __name__ == "__main__":
    d_model, num_class, pool_size = 32, 10, 2     # pool_size unused by the forward
    B, S = 2, 8

    key = jax.random.PRNGKey(0)
    kx, kw, kb, kx2 = jax.random.split(key, 4)
    x = jax.random.normal(kx, (B, S, 2 * d_model), jnp.float32)

    L = (2 * d_model - POOL_K) // POOL_S + 1      # = d_model - 2 = 30
    params = {
        # Linear weight stored pre-transposed to (in_features, out_features).
        "w": jax.random.normal(kw, (L, num_class), jnp.float32) * 0.1,
        "b": jax.random.normal(kb, (num_class,), jnp.float32) * 0.1,
    }

    # One-time weight fold, hoisted out of the per-call forward path.
    folded = fold_params(params, d_model)

    # Small check at the spec shapes.
    out = jax.block_until_ready(final_module_forward(x, folded, d_model))
    ref = reference(x, params, d_model)
    np.testing.assert_allclose(np.asarray(out), np.asarray(ref),
                               rtol=1e-4, atol=2e-4)

    # Slightly larger check: exercises the ragged last grid block and the
    # 3-deep buffered activation path used at production sizes.
    x2 = jax.random.normal(kx2, (6, 123, 2 * d_model), jnp.float32)
    out2 = jax.block_until_ready(final_module_forward(x2, folded, d_model))
    ref2 = reference(x2, params, d_model)
    np.testing.assert_allclose(np.asarray(out2), np.asarray(ref2),
                               rtol=1e-4, atol=2e-4)

    print("KERNEL_OK")
</pallas_src>

<mosaic_0001>
module attributes {stable_mosaic.version = 11 : i64} {
  func.func @final_module_kernel(%arg0: i32, %arg1: memref<8x64xf32, #tpu.memory_space<vmem>>, %arg2: memref<60x10xf32, #tpu.memory_space<vmem>>, %arg3: memref<1x10xf32, #tpu.memory_space<vmem>>, %arg4: memref<8x10xf32, #tpu.memory_space<vmem>>) attributes {dimension_semantics = [#tpu.dimension_semantics<parallel>], iteration_bounds = array<i64: 2>, scalar_prefetch = 0 : i64, scratch_operands = 0 : i64, tpu.core_type = #tpu.core_type<tc>, window_params = [{transform_indices = @transform_0, window_bounds = array<i64: 8, 64>}, {pipeline_mode = #tpu.pipeline_mode<synchronous>, transform_indices = @transform_1, window_bounds = array<i64: 60, 10>}, {pipeline_mode = #tpu.pipeline_mode<synchronous>, transform_indices = @transform_2, window_bounds = array<i64: 1, 10>}, {transform_indices = @transform_3, window_bounds = array<i64: 8, 10>}]} {
    %c0 = arith.constant 0 : index
    %c0_0 = arith.constant 0 : index
    %0 = vector.load %arg1[%c0, %c0_0] : memref<8x64xf32, #tpu.memory_space<vmem>>, vector<8x64xf32>
    %1 = vector.extract_strided_slice %0 {offsets = [0, 0], sizes = [8, 60], strides = [1, 1]} : vector<8x64xf32> to vector<8x60xf32>
    %2 = vector.extract_strided_slice %0 {offsets = [0, 1], sizes = [8, 60], strides = [1, 1]} : vector<8x64xf32> to vector<8x60xf32>
    %3 = arith.maximumf %1, %2 : vector<8x60xf32>
    %4 = vector.extract_strided_slice %0 {offsets = [0, 2], sizes = [8, 60], strides = [1, 1]} : vector<8x64xf32> to vector<8x60xf32>
    %5 = arith.maximumf %3, %4 : vector<8x60xf32>
    %6 = vector.extract_strided_slice %0 {offsets = [0, 3], sizes = [8, 60], strides = [1, 1]} : vector<8x64xf32> to vector<8x60xf32>
    %7 = arith.maximumf %5, %6 : vector<8x60xf32>
    %8 = vector.extract_strided_slice %0 {offsets = [0, 4], sizes = [8, 60], strides = [1, 1]} : vector<8x64xf32> to vector<8x60xf32>
    %9 = arith.maximumf %7, %8 : vector<8x60xf32>
    %c0_1 = arith.constant 0 : index
    %c0_2 = arith.constant 0 : index
    %10 = vector.load %arg2[%c0_1, %c0_2] : memref<60x10xf32, #tpu.memory_space<vmem>>, vector<60x10xf32>
    %cst = arith.constant dense<0.000000e+00> : vector<8x10xf32>
    %11 = tpu.matmul %9, %10, %cst {dimension_numbers = #tpu.dot_dimension_numbers<[1], [0], [0], [1], [0, 0, 1, 1], [], []>} : vector<8x60xf32>, vector<60x10xf32>, vector<8x10xf32> -> vector<8x10xf32>
    %c0_3 = arith.constant 0 : index
    %c0_4 = arith.constant 0 : index
    %12 = vector.load %arg3[%c0_3, %c0_4] : memref<1x10xf32, #tpu.memory_space<vmem>>, vector<1x10xf32>
    %13 = vector.broadcast %12 : vector<1x10xf32> to vector<8x10xf32>
    %14 = arith.addf %11, %13 : vector<8x10xf32>
    %15 = arith.negf %14 : vector<8x10xf32>
    %16 = math.exp %15 : vector<8x10xf32>
    %cst_5 = arith.constant 1.000000e+00 : f32
    %17 = vector.broadcast %cst_5 : f32 to vector<8x10xf32>
    %18 = arith.addf %17, %16 : vector<8x10xf32>
    %19 = arith.divf %17, %18 : vector<8x10xf32>
    %c0_6 = arith.constant 0 : index
    %c0_7 = arith.constant 0 : index
    %20 = vector.load %arg4[%c0_6, %c0_7] : memref<8x10xf32, #tpu.memory_space<vmem>>, vector<8x10xf32>
    tpu.vector_store %arg4[%c0_6, %c0_7], %19 {strides = array<i32>} : memref<8x10xf32, #tpu.memory_space<vmem>>, vector<8x10xf32>,
    return
  }
  func.func @transform_0(%arg0: i32) -> (i32, i32) {
    %c0_i32 = arith.constant 0 : i32
    %c0_i32_0 = arith.constant 0 : i32
    return %arg0, %c0_i32 : i32, i32
  }
  func.func @transform_1(%arg0: i32) -> (i32, i32) {
    %c0_i32 = arith.constant 0 : i32
    %c0_i32_0 = arith.constant 0 : i32
    %c0_i32_1 = arith.constant 0 : i32
    return %c0_i32, %c0_i32_0 : i32, i32
  }
  func.func @transform_2(%arg0: i32) -> (i32, i32) {
    %c0_i32 = arith.constant 0 : i32
    %c0_i32_0 = arith.constant 0 : i32
    %c0_i32_1 = arith.constant 0 : i32
    return %c0_i32, %c0_i32_0 : i32, i32
  }
  func.func @transform_3(%arg0: i32) -> (i32, i32) {
    %c0_i32 = arith.constant 0 : i32
    %c0_i32_0 = arith.constant 0 : i32
    return %arg0, %c0_i32 : i32, i32
  }
}

</mosaic_0001>

<llo_original>
// kernel: tpu_custom_call.1
$region0: #{tpu_custom_call.1}
  #allocation0 [shape = 'u32[]', space=smem, size = 0x4, offset = 0x4, fixed_abs, tag = 'smem constant byte address 0x4 - core index']
  #allocation1 [shape = 'u32[144,128]{1,0:T(1,128)}', space=vmem, size = 0x12000, scoped, tag = 'internal scratch']
  %s0 = inlined_call_operand.vmem [shape: f32[16,64], index: 0, kind: input, shape index: {}]
  %s1 = inlined_call_operand.vmem [shape: f32[60,10], index: 1, kind: input, shape index: {}]
  %s2 = inlined_call_operand.vmem [shape: f32[1,10], index: 2, kind: input, shape index: {}]
  %s3 = inlined_call_operand.hbm [shape: f32[16,10], index: 3, kind: output, shape index: {}]
  %s4 = sld [smem:[#allocation0]]
  $region45: #{tpu_custom_call.1} parent=0
    _
  %s6 = ssub.s32 1, %s4
  %s7 = scalar_select 0, %s6, %s4
  $region1: #{tpu_custom_call.1} parent=0
    #allocation2 [shape = 'u8[8192]{0}', space=vmem, size = 0x2000, scoped, tag = 'output window, operand 0']
    #allocation3 [shape = 's32[2]{0}', space=sflag, size = 0x8, scoped, tag = 'scoped memory for tpu_custom_call.1']
    %8 = vsyncpa [#allocation3], 0
    %s9 = scalar_lea.sflag [#allocation3], 1
    %10 = vsyncpa %s9, 0
    loop: start=0, step=1, limit=4
    $region2: #{tpu_custom_call.1} parent=1 // loop_pre_header
      _
    $region3: #{tpu_custom_call.1} parent=1 // loop_header
      %s12 = sphi 0, %s16
      %p13 = scmp.ge.s32.totalorder %s12, 4
      %s22 = sphi 0, %s24
      %s25 = sphi 0, %s22
      %s26 = sphi 0, %s25
      %s42 = sphi 0, %s26
      %s46 = sphi 0, %s46
      %s48 = sphi 0, %s46
      %s49 = sphi 0, %s48
      %s63 = sphi 0, %s49
      %s67 = sphi 0, %s67
      %s69 = sphi 0, %s67
      %s70 = sphi 0, %s69
      %s84 = sphi 0, %s70
      %s90 = sphi 0, %s92
      %s93 = sphi 0, %s90
      %s94 = sphi 0, %s93
      %s110 = sphi 0, %s94
    $region4: #{tpu_custom_call.1} parent=1 // loop_header_branch
      %15 = sbr.rel (%p13) target = $region8
    $region5: #{tpu_custom_call.1} parent=1 // loop_body
      %s17 = ssub.s32 %s12, 1
      %s18 = ssub.s32 %s12, 2
      %s19 = sadd.s32 %s12, 1
      %s20 = ssub.s32 %s12, %s19
      %p21 = scmp.eq.s32.totalorder %s20, 0
      %s23 = sadd.s32 %s22, 1
      %s24 = scalar_select %p21, %s22, %s23
      %p27 = pneg %p21
      %p28 = scmp.eq.s32.totalorder %s12, 1
      %p29 = por %p27, %p28
      %p30 = scmp.ne.s32.totalorder %s22, %s25
      %p31 = scmp.eq.s32.totalorder %s12, 0
      %p32 = por %p30, %p31
      %p33 = scmp.ne.s32.totalorder %s22, %s25
      %p34 = scmp.eq.s32.totalorder %s17, 1
      %p35 = por %p33, %p34
      %p36 = scmp.ne.s32.totalorder %s25, %s26
      %p37 = scmp.eq.s32.totalorder %s17, 0
      %p38 = por %p36, %p37
      %p39 = scmp.ne.s32.totalorder %s25, %s26
      %p40 = scmp.eq.s32.totalorder %s18, 1
      %p41 = por %p39, %p40
      %p43 = scmp.ne.s32.totalorder %s26, %s42
      %p44 = scmp.eq.s32.totalorder %s18, 0
      %p45 = por %p43, %p44
      %s47 = sadd.s32 %s46, 1
      %p50 = scmp.eq.s32.totalorder %s12, 1
      %p51 = scmp.ne.s32.totalorder %s46, %s48
      %p52 = scmp.eq.s32.totalorder %s12, 0
      %p53 = por %p51, %p52
      %p54 = scmp.ne.s32.totalorder %s46, %s48
      %p55 = scmp.eq.s32.totalorder %s17, 1
      %p56 = por %p54, %p55
      %p57 = scmp.ne.s32.totalorder %s48, %s49
      %p58 = scmp.eq.s32.totalorder %s17, 0
      %p59 = por %p57, %p58
      %p60 = scmp.ne.s32.totalorder %s48, %s49
      %p61 = scmp.eq.s32.totalorder %s18, 1
      %p62 = por %p60, %p61
      %p64 = scmp.ne.s32.totalorder %s49, %s63
      %p65 = scmp.eq.s32.totalorder %s18, 0
      %p66 = por %p64, %p65
      %s68 = sadd.s32 %s67, 1
      %p71 = scmp.eq.s32.totalorder %s12, 1
      %p72 = scmp.ne.s32.totalorder %s67, %s69
      %p73 = scmp.eq.s32.totalorder %s12, 0
      %p74 = por %p72, %p73
      %p75 = scmp.ne.s32.totalorder %s67, %s69
      %p76 = scmp.eq.s32.totalorder %s17, 1
      %p77 = por %p75, %p76
      %p78 = scmp.ne.s32.totalorder %s69, %s70
      %p79 = scmp.eq.s32.totalorder %s17, 0
      %p80 = por %p78, %p79
      %p81 = scmp.ne.s32.totalorder %s69, %s70
      %p82 = scmp.eq.s32.totalorder %s18, 1
      %p83 = por %p81, %p82
      %p85 = scmp.ne.s32.totalorder %s70, %s84
      %p86 = scmp.eq.s32.totalorder %s18, 0
      %p87 = por %p85, %p86
      %s88 = ssub.s32 %s12, %s19
      %p89 = scmp.eq.s32.totalorder %s88, 0
      %s91 = sadd.s32 %s90, 1
      %s92 = scalar_select %p89, %s90, %s91
      %p95 = pneg %p89
      %p96 = scmp.eq.s32.totalorder %s12, 1
      %p97 = por %p95, %p96
      %p98 = scmp.ne.s32.totalorder %s90, %s93
      %p99 = scmp.eq.s32.totalorder %s12, 0
      %p100 = por %p98, %p99
      %p101 = scmp.ne.s32.totalorder %s90, %s93
      %p102 = scmp.eq.s32.totalorder %s17, 1
      %p103 = por %p101, %p102
      %p104 = scmp.ne.s32.totalorder %s93, %s94
      %p105 = scmp.eq.s32.totalorder %s17, 0
      %p106 = por %p104, %p105
      %p107 = scmp.ne.s32.totalorder %s93, %s94
      %p108 = scmp.eq.s32.totalorder %s18, 1
      %p109 = por %p107, %p108
      %p111 = scmp.ne.s32.totalorder %s94, %s110
      %p112 = scmp.eq.s32.totalorder %s18, 0
      %p113 = por %p111, %p112
      %p114 = scmp.le.s32.totalorder 1, %s12
      %p115 = scmp.lt.s32.totalorder %s12, 3
      %p116 = pnand %p114, %p115
      %p117 = pneg %p116
      // Predicated region
      $region9: #{tpu_custom_call.1} parent=5 // pred_check
        _
      $region10: #{tpu_custom_call.1} parent=5 // pred_check_branch
        %119 = sbr.rel (%p116) target = $region12
      $region11: #{tpu_custom_call.1} parent=5 // pred_region
        %s120 = ssub.s32 %s12, 1
        // Predicated region
        $region13: #{tpu_custom_call.1} parent=11 // pred_check
          %p121 = pneg %p59
        $region14: #{tpu_custom_call.1} parent=11 // pred_check_branch
          %123 = sbr.rel (%p121) target = $region16
        $region15: #{tpu_custom_call.1} parent=11 // pred_region
          _
        $region16: #{tpu_custom_call.1} parent=11 // pred_fallthru
          _
        // Predicated region
        $region17: #{tpu_custom_call.1} parent=11 // pred_check
          %p124 = pneg %p80
        $region18: #{tpu_custom_call.1} parent=11 // pred_check_branch
          %126 = sbr.rel (%p124) target = $region20
        $region19: #{tpu_custom_call.1} parent=11 // pred_region
          _
        $region20: #{tpu_custom_call.1} parent=11 // pred_fallthru
          _
      $region12: #{tpu_custom_call.1} parent=5 // pred_fallthru
        _
      %p127 = scmp.lt.s32.totalorder %s12, 2
      // Predicated region
      $region21: #{tpu_custom_call.1} parent=5 // pred_check
        %p128 = pneg %p127
      $region22: #{tpu_custom_call.1} parent=5 // pred_check_branch
        %130 = sbr.rel (%p128) target = $region24
      $region23: #{tpu_custom_call.1} parent=5 // pred_region
        // Predicated region
        $region25: #{tpu_custom_call.1} parent=23 // pred_check
          %p131 = pneg %p32
        $region26: #{tpu_custom_call.1} parent=23 // pred_check_branch
          %133 = sbr.rel (%p131) target = $region28
        $region27: #{tpu_custom_call.1} parent=23 // pred_region
          %p134 = scmp.lt.s32.totalorder %s12, 1
          %s135 = scalar_select %p134, %s12, 1
          %s136 = smul.addr %s135, 8
          %s137 = scalar_lea.vmem %s0, %s136
        $region28: #{tpu_custom_call.1} parent=23 // pred_fallthru
          _
      $region24: #{tpu_custom_call.1} parent=5 // pred_fallthru
        _
      %p138 = scmp.le.s32.totalorder 1, %s12
      %p139 = scmp.lt.s32.totalorder %s12, 3
      %p140 = pnand %p138, %p139
      %p141 = pneg %p140
      // Predicated region
      $region29: #{tpu_custom_call.1} parent=5 // pred_check
        _
      $region30: #{tpu_custom_call.1} parent=5 // pred_check_branch
        %143 = sbr.rel (%p140) target = $region32
      $region31: #{tpu_custom_call.1} parent=5 // pred_region
        %s144 = ssub.s32 %s12, 1
        %p145 = scmp.lt.s32.totalorder %s17, 1
        %s146 = scalar_select %p145, %s17, 1
        %s147 = smul.addr %s146, 8
        %s148 = scalar_lea.vmem %s0, %s147
        %p149 = pneg %p38
        %p150 = pneg %p35
        %p151 = pneg %p59
        %p152 = pneg %p56
        %p153 = pneg %p80
        %p154 = pneg %p77
        %p155 = pneg %p106
        %p156 = pneg %p103
        %s157 = sand.u32 %s93, 1
        %s158 = scalar_lea.sflag [#allocation3], %s157
        %s159 = sand.u32 %s93, 1
        %s160 = smul.addr %s159, 8
        %s161 = scalar_lea.vmem [#allocation2], %s160
        %p162 = scmp.lt.s32.totalorder %s17, 1
        %s163 = scalar_select %p162, %s17, 1
        %s164 = smul.addr %s163, 8
        %s165 = scalar_lea.vmem %s0, %s164
        %v166 = vld [vmem:[%s165] sm:$0xff]
        %168 = vrot.lane.b32.xlu0 %v166, 127
        %v169 = vpop.permute.xlu0 %168
        %v171 = vmax.f32 %v166, %v169
        %172 = vrot.lane.b32.xlu0 %v166, 126
        %v173 = vpop.permute.xlu0 %172
        %v175 = vmax.f32 %v171, %v173
        %176 = vrot.lane.b32.xlu0 %v166, 125
        %v177 = vpop.permute.xlu0 %176
        %v179 = vmax.f32 %v175, %v177
        %180 = vrot.lane.b32.xlu0 %v166, 124
        %v181 = vpop.permute.xlu0 %180
        %v183 = vmax.f32 %v179, %v181
        %v184 = vld [vmem:[%s1] sm:$0xff]
        %v185 = vld [vmem:[%s1 + $0x8] sm:$0xff]
        %v186 = vld [vmem:[%s1 + $0x10] sm:$0xff]
        %v187 = vld [vmem:[%s1 + $0x18] sm:$0xff]
        %v188 = vld [vmem:[%s1 + $0x20] sm:$0xff]
        %v189 = vld [vmem:[%s1 + $0x28] sm:$0xff]
        %v190 = vld [vmem:[%s1 + $0x30] sm:$0xff]
        %v191 = vld [vmem:[%s1 + $0x38] sm:$0xf]
        %v192 = vld [vmem:[%s2] sm:$0x1]
        %v194 = vlaneseq
        %v195 = vshrl.u32 %v194, 7
        %v196 = vsub.s32 0, %v195
        %v197 = vrot.slane %v192, %v196
        %vm199 = vcmask 490496
        %v201 = vsel %vm199, %v183, 0
        %vm203 = vcmask 1043456
        %v205 = vsel %vm203, %v191, 0
        %207 = vmatprep.subr.mxu0 0.0
        %208 = vmatpush1.msra.mxu0 0.0
        %209 = vmatprep.subr.mxu0 0.0
        %210 = vmatpush1.msra.mxu0 0.0
        %211 = vmatprep.subr.mxu0 0.0
        %212 = vmatpush1.msra.mxu0 0.0
        %213 = vmatprep.subr.mxu0 0.0
        %214 = vmatpush1.msra.mxu0 0.0
        %215 = vmatprep.subr.mxu0 0.0
        %216 = vmatpush1.msra.mxu0 0.0
        %217 = vmatprep.subr.mxu0 0.0
        %218 = vmatpush1.msra.mxu0 0.0
        %219 = vmatprep.subr.mxu0 0.0
        %220 = vmatpush1.msra.mxu0 0.0
        %221 = vmatprep.subr.mxu0 0.0
        %222 = vmatpush1.msra.mxu0 0.0
        %223 = vmatprep.subr.mxu0 0.0
        %224 = vmatpush1.msra.mxu0 %v205
        %225 = vmatprep.subr.mxu0 0.0
        %226 = vmatpush1.msra.mxu0 %v190
        %227 = vmatprep.subr.mxu0 0.0
        %228 = vmatpush1.msra.mxu0 %v189
        %229 = vmatprep.subr.mxu0 0.0
        %230 = vmatpush1.msra.mxu0 %v188
        %231 = vmatprep.subr.mxu0 0.0
        %232 = vmatpush1.msra.mxu0 %v187
        %233 = vmatprep.subr.mxu0 0.0
        %234 = vmatpush1.msra.mxu0 %v186
        %235 = vmatprep.subr.mxu0 0.0
        %236 = vmatpush1.msra.mxu0 %v185
        %237 = vmatprep.subr.mxu0 0.0
        %238 = vmatpush1.msra.mxu0 %v184
        %239 = vmatprep.subr.mxu0 0.0
        %240 = vmatpush2.msra.mxu0 0.0
        %241 = vmatprep.subr.mxu0 0.0
        %242 = vmatpush2.msra.mxu0 0.0
        %243 = vmatprep.subr.mxu0 0.0
        %244 = vmatpush2.msra.mxu0 0.0
        %245 = vmatprep.subr.mxu0 0.0
        %246 = vmatpush2.msra.mxu0 0.0
        %247 = vmatprep.subr.mxu0 0.0
        %248 = vmatpush2.msra.mxu0 0.0
        %249 = vmatprep.subr.mxu0 0.0
        %250 = vmatpush2.msra.mxu0 0.0
        %251 = vmatprep.subr.mxu0 0.0
        %252 = vmatpush2.msra.mxu0 0.0
        %253 = vmatprep.subr.mxu0 0.0
        %254 = vmatpush2.msra.mxu0 0.0
        %255 = vmatprep.subr.mxu0 0.0
        %256 = vmatpush2.msra.mxu0 0.0
        %257 = vmatprep.subr.mxu0 0.0
        %258 = vmatpush2.msra.mxu0 0.0
        %259 = vmatprep.subr.mxu0 0.0
        %260 = vmatpush2.msra.mxu0 0.0
        %261 = vmatprep.subr.mxu0 0.0
        %262 = vmatpush2.msra.mxu0 0.0
        %263 = vmatprep.subr.mxu0 0.0
        %264 = vmatpush2.msra.mxu0 0.0
        %265 = vmatprep.subr.mxu0 0.0
        %266 = vmatpush2.msra.mxu0 0.0
        %267 = vmatprep.subr.mxu0 0.0
        %268 = vmatpush2.msra.mxu0 0.0
        %269 = vmatprep.subr.mxu0 0.0
        %270 = vmatpush2.msra.mxu0 0.0
        %271 = vmatprep.mubr.f32.mxu0 0.0
        %272 = vmatmul.mubr.f32.gmra.mxu0 %v201
        %v273 = vpop.f32.mrf.mxu0
        %v274 = vadd.f32 %v197, %v273
        %v275 = vpop.f32.mrf.mxu0
        %276 = vdwg.mxu0
        %v277 = vxor.u32 %v274, 2147483648
        %v278 = vmul.f32 %v277, 1.442695
        %v279 = vpow.pop %v278
        %v280 = vadd.f32 %v279, 1.0
        %v281 = vrcp.pop %v280
        %v282 = vmul.f32 1.0, %v281
        %vm283 = vcmask 80896
        %284 = vst.msk [vmem:[%s161] sm:$0xff] %vm283, %v282
        %s285 = sand.u32 %s93, 1
        %s286 = scalar_lea.sflag [#allocation3], %s285
        %s287 = sand.u32 %s93, 1
        %s288 = smul.addr %s287, 8
        %s289 = scalar_lea.vmem [#allocation2], %s288
        // Predicated region
        $region33: #{tpu_custom_call.1} parent=31 // pred_check
          %p290 = pneg %p103
        $region34: #{tpu_custom_call.1} parent=31 // pred_check_branch
          %292 = sbr.rel (%p290) target = $region36
        $region35: #{tpu_custom_call.1} parent=31 // pred_region
          %s294 = ssub.s32 128, 128
          %295 = vsyncadd %s286, %s294
          %s296 = smul.addr %s17, 128
          %s297 = scalar_lea.hbm %s3, %s296
          %s299 = sshll.u32 %s289, 4
          %s300 = int_to_ptr.vmem [resolvable:$true] %s299
          %302 = dma.vmem_to_hbm [thread:$0]  %s300, 128, %s297, %s286
        $region36: #{tpu_custom_call.1} parent=31 // pred_fallthru
          _
      $region32: #{tpu_custom_call.1} parent=5 // pred_fallthru
        _
      %p303 = scmp.le.s32.totalorder 2, %s12
      // Predicated region
      $region37: #{tpu_custom_call.1} parent=5 // pred_check
        %p304 = pneg %p303
      $region38: #{tpu_custom_call.1} parent=5 // pred_check_branch
        %306 = sbr.rel (%p304) target = $region40
      $region39: #{tpu_custom_call.1} parent=5 // pred_region
        %s307 = ssub.s32 %s12, 2
        // Predicated region
        $region41: #{tpu_custom_call.1} parent=39 // pred_check
          %p308 = pneg %p109
        $region42: #{tpu_custom_call.1} parent=39 // pred_check_branch
          %310 = sbr.rel (%p308) target = $region44
        $region43: #{tpu_custom_call.1} parent=39 // pred_region
          %s311 = sand.u32 %s94, 1
          %s312 = scalar_lea.sflag [#allocation3], %s311
          %s313 = sand.u32 %s94, 1
          %s314 = smul.addr %s313, 8
          %s315 = scalar_lea.vmem [#allocation2], %s314
          %316 = dma.done %s312, 128
        $region44: #{tpu_custom_call.1} parent=39 // pred_fallthru
          _
      $region40: #{tpu_custom_call.1} parent=5 // pred_fallthru
        _
    $region6: #{tpu_custom_call.1} parent=1 // loop_footer
      %s16 = sadd.s32 1, %s12
    $region7: #{tpu_custom_call.1} parent=1 // loop_footer_branch
      %11 = sbr.rel target = $region3
    $region8: #{tpu_custom_call.1} parent=1 // loop_exit
      _
    %317 = vsyncpa [#allocation3], 1
    %s318 = scalar_lea.sflag [#allocation3], 1
    %319 = vsyncpa %s318, 1

</llo_original>
